<compile_context>
chip_gen: v5e
topology: v5e:2x2
jax: 0.10.0
libtpu: 0.0.40
codegen_flags: <defaults>
</compile_context>

<pallas_src>
import jax
import jax.numpy as jnp
from jax.experimental import pallas as pl
from jax.experimental.pallas import tpu as pltpu


def _node_partial_kernel(pred_ref, targ_ref, fs_ref, out_ref):
    """Accumulate per-node, feature-scaled row sums over the sample axis.

    pred_ref, targ_ref : (1, tn, F)  one sample x node-tile x features
    fs_ref             : (1, F)      feature scalar (already divided by F), resident
    out_ref            : (tn, 1)     per-node partial sums, accumulated over samples
    """
    s = pl.program_id(1)

    @pl.when(s == 0)
    def _init():
        out_ref[...] = jnp.zeros_like(out_ref)

    # difference in native dtype (bf16 allowed), accumulate in f32
    d = (pred_ref[0] - targ_ref[0]).astype(jnp.float32)        # (tn, F)
    d = d * fs_ref[...]                                         # per-feature scale (incl. 1/F)
    out_ref[...] += jnp.sum(d, axis=-1, keepdims=True)          # (tn, 1)


def _choose_node_tile(N, F, itemsize, vmem_budget_bytes, max_tile_bytes=8 << 20):
    """Pick the node-tile size so the double-buffered VMEM footprint fits the budget."""
    lanes = -(-F // 128) * 128                       # lane-padded feature width in VMEM
    # 2 inputs x 2 pipeline buffers (lane padded) + (tn,1) f32 output x 2 buffers
    per_node_vmem = 4 * lanes * itemsize + 2 * 512
    tn = max(8, (vmem_budget_bytes - (1 << 20)) // per_node_vmem)
    tn = min(tn, max(8, max_tile_bytes // (F * itemsize)))   # keep per-step HBM tile sane
    tn = min(tn, -(-N // 8) * 8)                             # no point exceeding node count
    return max(8, (tn // 8) * 8)                             # sublane aligned


def functional_weighted_loss(pred, target, node_weights, feature_scalar,
                             *, node_tile=None, vmem_budget_bytes=40 << 20):
    """Forward of FunctionalWeightedLoss with calculate_difference = pred - target.

    pred, target   : (bs, ensemble, lat*lon, n_outputs), any float dtype (kept as-is)
    node_weights   : (lat*lon,)
    feature_scalar : (n_outputs,)  -- the ScaleTensor resolved on the last dim
    Implements squash=True, feature_scale=True, feature_indices=None, ignore_nans=False.
    """
    bs, ens, N, F = pred.shape
    S = bs * ens
    itemsize = jnp.dtype(pred.dtype).itemsize

    tn = node_tile if node_tile is not None else _choose_node_tile(
        N, F, itemsize, vmem_budget_bytes)
    tn = max(8, (tn // 8) * 8)
    n_node_blocks = pl.cdiv(N, tn)

    pred3 = pred.reshape(S, N, F)       # contiguous reshape: free, no dtype change
    targ3 = target.reshape(S, N, F)
    fs = (feature_scalar.astype(jnp.float32) / F).reshape(1, F)   # fold 1/F of the mean

    # Explicit scoped-VMEM sizing: inputs are lane-padded to multiples of 128 in VMEM.
    lanes = -(-F // 128) * 128
    vmem_need = int(4 * tn * lanes * itemsize      # pred + target, double buffered
                    + 2 * tn * 512                 # (tn, 1) f32 output, double buffered
                    + 2 * 8 * lanes * 4            # resident feature scalar
                    + (2 << 20))                   # headroom

    node_partials = pl.pallas_call(
        _node_partial_kernel,
        out_shape=jax.ShapeDtypeStruct((N, 1), jnp.float32),
        grid_spec=pltpu.PrefetchScalarGridSpec(
            num_scalar_prefetch=0,
            grid=(n_node_blocks, S),
            in_specs=[
                pl.BlockSpec((1, tn, F), lambda ki, s: (s, ki, 0)),   # pred tile
                pl.BlockSpec((1, tn, F), lambda ki, s: (s, ki, 0)),   # target tile
                pl.BlockSpec((1, F), lambda ki, s: (0, 0)),           # feature scalar (resident)
            ],
            out_specs=pl.BlockSpec((tn, 1), lambda ki, s: (ki, 0)),   # per-node partials
        ),
        compiler_params=pltpu.CompilerParams(
            dimension_semantics=("parallel", "arbitrary"),
            vmem_limit_bytes=vmem_need,
        ),
    )(pred3, targ3, fs)

    nw = node_weights.astype(jnp.float32)
    num = jnp.sum(node_partials[:, 0] * nw)        # sum_n nw[n] * C[n]
    denom = S * jnp.sum(nw)                        # sum of broadcast node weights
    return num / denom


def reference_loss(pred, target, node_weights, feature_scalar):
    """Pure-JAX mirror of BaseWeightedLoss.forward (squash=True)."""
    out = (pred - target) * feature_scalar          # scale() on last dim
    x = jnp.mean(out.astype(jnp.float32), axis=-1)  # avg over n_outputs
    nw = jnp.broadcast_to(node_weights, x.shape)    # expand_as
    x = x * nw
    x = x / jnp.sum(nw)
    return jnp.sum(x)


# TODO(synk): squash=False branch (per-output losses, reduce over dims 0,1,2),
# ignore_nans=True (nan-aware numerator AND denominator) and feature_indices
# gathering of the scalar are not implemented in the kernel.

if __name__ == "__main__":
    key = jax.random.PRNGKey(0)

    # (bs, ens, N=lat*lon, F=n_outputs, explicit node_tile or None for auto)
    configs = [
        (2, 2, 32, 8, None),   # tile == N, feature dim small
        (1, 2, 40, 5, 16),     # ragged node tiling (N % tile != 0), odd feature count
        (2, 1, 37, 12, 16),    # N not a multiple of 8
    ]

    for idx, (bs, ens, N, F, tile) in enumerate(configs):
        key, k1, k2 = jax.random.split(key, 3)
        pred = jax.random.normal(k1, (bs, ens, N, F), dtype=jnp.float32)
        target = jax.random.normal(k2, (bs, ens, N, F), dtype=jnp.float32)

        # Deterministic "parameters": node_weights buffer (N,), ScaleTensor on dim -1 (F,)
        node_weights = 0.5 + jnp.arange(N, dtype=jnp.float32) / N
        feature_scalar = 1.0 + 0.1 * jnp.arange(F, dtype=jnp.float32)

        loss = functional_weighted_loss(pred, target, node_weights, feature_scalar,
                                        node_tile=tile)
        loss = jax.block_until_ready(loss)

        ref = reference_loss(pred, target, node_weights, feature_scalar)
        assert jnp.allclose(loss, ref, rtol=1e-4, atol=1e-5), (idx, loss, ref)

    print("KERNEL_OK")
</pallas_src>

<mosaic_0001>
module attributes {stable_mosaic.version = 11 : i64} {
  func.func @_node_partial_kernel(%arg0: i32, %arg1: i32, %arg2: memref<1x32x8xf32, #tpu.memory_space<vmem>>, %arg3: memref<1x32x8xf32, #tpu.memory_space<vmem>>, %arg4: memref<1x8xf32, #tpu.memory_space<vmem>>, %arg5: memref<32x1xf32, #tpu.memory_space<vmem>>) attributes {dimension_semantics = [#tpu.dimension_semantics<parallel>, #tpu.dimension_semantics<arbitrary>], iteration_bounds = array<i64: 1, 4>, scalar_prefetch = 0 : i64, scratch_operands = 0 : i64, tpu.core_type = #tpu.core_type<tc>, window_params = [{transform_indices = @transform_0, window_bounds = array<i64: 1, 32, 8>}, {transform_indices = @transform_1, window_bounds = array<i64: 1, 32, 8>}, {pipeline_mode = #tpu.pipeline_mode<synchronous>, transform_indices = @transform_2, window_bounds = array<i64: 1, 8>}, {transform_indices = @transform_3, window_bounds = array<i64: 32, 1>}]} {
    %c0_i32 = arith.constant 0 : i32
    %0 = arith.cmpi eq, %arg1, %c0_i32 : i32
    %1 = arith.extui %0 : i1 to i32
    %c0_i32_0 = arith.constant 0 : i32
    %2 = arith.cmpi ne, %1, %c0_i32_0 : i32
    scf.if %2 {
      %cst_12 = arith.constant 0.000000e+00 : f32
      %16 = vector.broadcast %cst_12 : f32 to vector<32x1xf32>
      %c0_13 = arith.constant 0 : index
      %c0_14 = arith.constant 0 : index
      %17 = vector.load %arg5[%c0_13, %c0_14] : memref<32x1xf32, #tpu.memory_space<vmem>>, vector<32x1xf32>
      tpu.vector_store %arg5[%c0_13, %c0_14], %16 {strides = array<i32>} : memref<32x1xf32, #tpu.memory_space<vmem>>, vector<32x1xf32>,
    } else {
    }
    %c0 = arith.constant 0 : index
    %c0_1 = arith.constant 0 : index
    %c0_2 = arith.constant 0 : index
    %3 = vector.load %arg2[%c0, %c0_1, %c0_2] : memref<1x32x8xf32, #tpu.memory_space<vmem>>, vector<1x32x8xf32>
    %4 = vector.shape_cast %3 : vector<1x32x8xf32> to vector<32x8xf32>
    %c0_3 = arith.constant 0 : index
    %c0_4 = arith.constant 0 : index
    %c0_5 = arith.constant 0 : index
    %5 = vector.load %arg3[%c0_3, %c0_4, %c0_5] : memref<1x32x8xf32, #tpu.memory_space<vmem>>, vector<1x32x8xf32>
    %6 = vector.shape_cast %5 : vector<1x32x8xf32> to vector<32x8xf32>
    %7 = arith.subf %4, %6 : vector<32x8xf32>
    %c0_6 = arith.constant 0 : index
    %c0_7 = arith.constant 0 : index
    %8 = vector.load %arg4[%c0_6, %c0_7] : memref<1x8xf32, #tpu.memory_space<vmem>>, vector<1x8xf32>
    %9 = vector.broadcast %8 : vector<1x8xf32> to vector<32x8xf32>
    %10 = arith.mulf %7, %9 : vector<32x8xf32>
    %c0_8 = arith.constant 0 : index
    %c0_9 = arith.constant 0 : index
    %11 = vector.load %arg5[%c0_8, %c0_9] : memref<32x1xf32, #tpu.memory_space<vmem>>, vector<32x1xf32>
    %cst = arith.constant dense<0.000000e+00> : vector<32xf32>
    %12 = vector.multi_reduction <add>, %10, %cst [1] : vector<32x8xf32> to vector<32xf32>
    %13 = vector.shape_cast %12 : vector<32xf32> to vector<32x1xf32>
    %14 = arith.addf %11, %13 : vector<32x1xf32>
    %c0_10 = arith.constant 0 : index
    %c0_11 = arith.constant 0 : index
    %15 = vector.load %arg5[%c0_10, %c0_11] : memref<32x1xf32, #tpu.memory_space<vmem>>, vector<32x1xf32>
    tpu.vector_store %arg5[%c0_10, %c0_11], %14 {strides = array<i32>} : memref<32x1xf32, #tpu.memory_space<vmem>>, vector<32x1xf32>,
    return
  }
  func.func @transform_0(%arg0: i32, %arg1: i32) -> (i32, i32, i32) {
    %c0_i32 = arith.constant 0 : i32
    %c0_i32_0 = arith.constant 0 : i32
    return %arg1, %arg0, %c0_i32 : i32, i32, i32
  }
  func.func @transform_1(%arg0: i32, %arg1: i32) -> (i32, i32, i32) {
    %c0_i32 = arith.constant 0 : i32
    %c0_i32_0 = arith.constant 0 : i32
    return %arg1, %arg0, %c0_i32 : i32, i32, i32
  }
  func.func @transform_2(%arg0: i32, %arg1: i32) -> (i32, i32) {
    %c0_i32 = arith.constant 0 : i32
    %c0_i32_0 = arith.constant 0 : i32
    %c0_i32_1 = arith.constant 0 : i32
    return %c0_i32, %c0_i32_0 : i32, i32
  }
  func.func @transform_3(%arg0: i32, %arg1: i32) -> (i32, i32) {
    %c0_i32 = arith.constant 0 : i32
    %c0_i32_0 = arith.constant 0 : i32
    return %arg0, %c0_i32 : i32, i32
  }
}

</mosaic_0001>

<llo_original>
// kernel: tpu_custom_call.1
$region0: #{tpu_custom_call.1}
  #allocation0 [shape = 'u32[]', space=smem, size = 0x4, offset = 0x4, fixed_abs, tag = 'smem constant byte address 0x4 - core index']
  #allocation1 [shape = 'u32[72,128]{1,0:T(1,128)}', space=vmem, size = 0x9000, scoped, tag = 'internal scratch']
  %s0 = inlined_call_operand.vmem [shape: f32[4,32,8], index: 0, kind: input, shape index: {}]
  %s1 = inlined_call_operand.vmem [shape: f32[4,32,8], index: 1, kind: input, shape index: {}]
  %s2 = inlined_call_operand.vmem [shape: f32[1,8], index: 2, kind: input, shape index: {}]
  %s3 = inlined_call_operand.vmem [shape: f32[32,1], index: 3, kind: output, shape index: {}]
  %s4 = sld [smem:[#allocation0]]
  $region49: #{tpu_custom_call.1} parent=0
    _
  %s6 = ssub.s32 1, %s4
  %s7 = scalar_select 0, %s6, %s4
  loop: start=0, step=1, limit=6
  $region2: #{tpu_custom_call.1} parent=0 // loop_pre_header
    _
  $region3: #{tpu_custom_call.1} parent=0 // loop_header
    %s9 = sphi 0, %s13
    %p10 = scmp.ge.s32.totalorder %s9, 6
    %s16 = sphi 0, %s28
    %s17 = sphi 0, %s24
    %s18 = sphi 0, %s16
    %s19 = sphi 0, %s17
    %s20 = sphi 0, %s18
    %s21 = sphi 0, %s19
    %s33 = sphi 0, %s35
    %s36 = sphi 0, %s33
    %s37 = sphi 0, %s36
    %s53 = sphi 0, %s37
    %s61 = sphi 0, %s63
    %s64 = sphi 0, %s61
    %s65 = sphi 0, %s64
    %s81 = sphi 0, %s65
    %s85 = sphi 0, %s85
    %s87 = sphi 0, %s85
    %s88 = sphi 0, %s87
    %s102 = sphi 0, %s88
    %s108 = sphi 0, %s110
    %s111 = sphi 0, %s108
    %s112 = sphi 0, %s111
    %s128 = sphi 0, %s112
  $region4: #{tpu_custom_call.1} parent=0 // loop_header_branch
    %12 = sbr.rel (%p10) target = $region8
  $region5: #{tpu_custom_call.1} parent=0 // loop_body
    %s14 = ssub.s32 %s9, 1
    %s15 = ssub.s32 %s9, 2
    %s22 = sadd.s32 1, %s17
    %p23 = scmp.ge.s32.totalorder %s22, 4
    %s24 = scalar_select %p23, 0, %s22
    %s25 = sadd.s32 1, %s16
    %s26 = scalar_select %p23, %s25, %s16
    %p27 = scmp.ge.s32.totalorder %s26, 1
    %s28 = scalar_select %p27, 0, %s26
    %s29 = ssub.s32 %s17, %s24
    %s30 = ssub.s32 %s16, %s28
    %s31 = sor.u32 %s29, %s30
    %p32 = scmp.eq.s32.totalorder %s31, 0
    %s34 = sadd.s32 %s33, 1
    %s35 = scalar_select %p32, %s33, %s34
    %p38 = pneg %p32
    %p39 = scmp.eq.s32.totalorder %s9, 3
    %p40 = por %p38, %p39
    %p41 = scmp.ne.s32.totalorder %s33, %s36
    %p42 = scmp.eq.s32.totalorder %s9, 0
    %p43 = por %p41, %p42
    %p44 = scmp.ne.s32.totalorder %s33, %s36
    %p45 = scmp.eq.s32.totalorder %s14, 3
    %p46 = por %p44, %p45
    %p47 = scmp.ne.s32.totalorder %s36, %s37
    %p48 = scmp.eq.s32.totalorder %s14, 0
    %p49 = por %p47, %p48
    %p50 = scmp.ne.s32.totalorder %s36, %s37
    %p51 = scmp.eq.s32.totalorder %s15, 3
    %p52 = por %p50, %p51
    %p54 = scmp.ne.s32.totalorder %s37, %s53
    %p55 = scmp.eq.s32.totalorder %s15, 0
    %p56 = por %p54, %p55
    %s57 = ssub.s32 %s17, %s24
    %s58 = ssub.s32 %s16, %s28
    %s59 = sor.u32 %s57, %s58
    %p60 = scmp.eq.s32.totalorder %s59, 0
    %s62 = sadd.s32 %s61, 1
    %s63 = scalar_select %p60, %s61, %s62
    %p66 = pneg %p60
    %p67 = scmp.eq.s32.totalorder %s9, 3
    %p68 = por %p66, %p67
    %p69 = scmp.ne.s32.totalorder %s61, %s64
    %p70 = scmp.eq.s32.totalorder %s9, 0
    %p71 = por %p69, %p70
    %p72 = scmp.ne.s32.totalorder %s61, %s64
    %p73 = scmp.eq.s32.totalorder %s14, 3
    %p74 = por %p72, %p73
    %p75 = scmp.ne.s32.totalorder %s64, %s65
    %p76 = scmp.eq.s32.totalorder %s14, 0
    %p77 = por %p75, %p76
    %p78 = scmp.ne.s32.totalorder %s64, %s65
    %p79 = scmp.eq.s32.totalorder %s15, 3
    %p80 = por %p78, %p79
    %p82 = scmp.ne.s32.totalorder %s65, %s81
    %p83 = scmp.eq.s32.totalorder %s15, 0
    %p84 = por %p82, %p83
    %s86 = sadd.s32 %s85, 1
    %p89 = scmp.eq.s32.totalorder %s9, 3
    %p90 = scmp.ne.s32.totalorder %s85, %s87
    %p91 = scmp.eq.s32.totalorder %s9, 0
    %p92 = por %p90, %p91
    %p93 = scmp.ne.s32.totalorder %s85, %s87
    %p94 = scmp.eq.s32.totalorder %s14, 3
    %p95 = por %p93, %p94
    %p96 = scmp.ne.s32.totalorder %s87, %s88
    %p97 = scmp.eq.s32.totalorder %s14, 0
    %p98 = por %p96, %p97
    %p99 = scmp.ne.s32.totalorder %s87, %s88
    %p100 = scmp.eq.s32.totalorder %s15, 3
    %p101 = por %p99, %p100
    %p103 = scmp.ne.s32.totalorder %s88, %s102
    %p104 = scmp.eq.s32.totalorder %s15, 0
    %p105 = por %p103, %p104
    %s106 = ssub.s32 %s16, %s28
    %p107 = scmp.eq.s32.totalorder %s106, 0
    %s109 = sadd.s32 %s108, 1
    %s110 = scalar_select %p107, %s108, %s109
    %p113 = pneg %p107
    %p114 = scmp.eq.s32.totalorder %s9, 3
    %p115 = por %p113, %p114
    %p116 = scmp.ne.s32.totalorder %s108, %s111
    %p117 = scmp.eq.s32.totalorder %s9, 0
    %p118 = por %p116, %p117
    %p119 = scmp.ne.s32.totalorder %s108, %s111
    %p120 = scmp.eq.s32.totalorder %s14, 3
    %p121 = por %p119, %p120
    %p122 = scmp.ne.s32.totalorder %s111, %s112
    %p123 = scmp.eq.s32.totalorder %s14, 0
    %p124 = por %p122, %p123
    %p125 = scmp.ne.s32.totalorder %s111, %s112
    %p126 = scmp.eq.s32.totalorder %s15, 3
    %p127 = por %p125, %p126
    %p129 = scmp.ne.s32.totalorder %s112, %s128
    %p130 = scmp.eq.s32.totalorder %s15, 0
    %p131 = por %p129, %p130
    %p132 = scmp.le.s32.totalorder 1, %s9
    %p133 = scmp.lt.s32.totalorder %s9, 5
    %p134 = pnand %p132, %p133
    %p135 = pneg %p134
    // Predicated region
    $region9: #{tpu_custom_call.1} parent=5 // pred_check
      _
    $region10: #{tpu_custom_call.1} parent=5 // pred_check_branch
      %137 = sbr.rel (%p134) target = $region12
    $region11: #{tpu_custom_call.1} parent=5 // pred_region
      %s138 = ssub.s32 %s9, 1
      // Predicated region
      $region13: #{tpu_custom_call.1} parent=11 // pred_check
        %p139 = pneg %p98
      $region14: #{tpu_custom_call.1} parent=11 // pred_check_branch
        %141 = sbr.rel (%p139) target = $region16
      $region15: #{tpu_custom_call.1} parent=11 // pred_region
        _
      $region16: #{tpu_custom_call.1} parent=11 // pred_fallthru
        _
    $region12: #{tpu_custom_call.1} parent=5 // pred_fallthru
      _
    %p142 = scmp.lt.s32.totalorder %s9, 4
    // Predicated region
    $region17: #{tpu_custom_call.1} parent=5 // pred_check
      %p143 = pneg %p142
    $region18: #{tpu_custom_call.1} parent=5 // pred_check_branch
      %145 = sbr.rel (%p143) target = $region20
    $region19: #{tpu_custom_call.1} parent=5 // pred_region
      // Predicated region
      $region21: #{tpu_custom_call.1} parent=19 // pred_check
        %p146 = pneg %p43
      $region22: #{tpu_custom_call.1} parent=19 // pred_check_branch
        %148 = sbr.rel (%p146) target = $region24
      $region23: #{tpu_custom_call.1} parent=19 // pred_region
        %s149 = smul.u32 4, %s16
        %p150 = scmp.lt.s32.totalorder %s17, 3
        %s151 = scalar_select %p150, %s17, 3
        %p152 = scmp.lt.s32.totalorder %s149, 3
        %s153 = scalar_select %p152, %s149, 3
        %s154 = smul.addr %s151, 4
        %s155 = sadd.s32 %s153, %s154
        %s156 = smul.addr %s155, 8
        %s157 = scalar_lea.vmem %s0, %s156
        %s158 = smul.u32 4, %s16
      $region24: #{tpu_custom_call.1} parent=19 // pred_fallthru
        _
      // Predicated region
      $region25: #{tpu_custom_call.1} parent=19 // pred_check
        %p159 = pneg %p71
      $region26: #{tpu_custom_call.1} parent=19 // pred_check_branch
        %161 = sbr.rel (%p159) target = $region28
      $region27: #{tpu_custom_call.1} parent=19 // pred_region
        %s162 = smul.u32 4, %s16
        %p163 = scmp.lt.s32.totalorder %s17, 3
        %s164 = scalar_select %p163, %s17, 3
        %p165 = scmp.lt.s32.totalorder %s162, 3
        %s166 = scalar_select %p165, %s162, 3
        %s167 = smul.addr %s164, 4
        %s168 = sadd.s32 %s166, %s167
        %s169 = smul.addr %s168, 8
        %s170 = scalar_lea.vmem %s1, %s169
        %s171 = smul.u32 4, %s16
      $region28: #{tpu_custom_call.1} parent=19 // pred_fallthru
        _
    $region20: #{tpu_custom_call.1} parent=5 // pred_fallthru
      _
    %p172 = scmp.le.s32.totalorder 1, %s9
    %p173 = scmp.lt.s32.totalorder %s9, 5
    %p174 = pnand %p172, %p173
    %p175 = pneg %p174
    // Predicated region
    $region29: #{tpu_custom_call.1} parent=5 // pred_check
      _
    $region30: #{tpu_custom_call.1} parent=5 // pred_check_branch
      %177 = sbr.rel (%p174) target = $region32
    $region31: #{tpu_custom_call.1} parent=5 // pred_region
      %s178 = ssub.s32 %s9, 1
      %s179 = smul.u32 4, %s18
      %p180 = scmp.lt.s32.totalorder %s19, 3
      %s181 = scalar_select %p180, %s19, 3
      %p182 = scmp.lt.s32.totalorder %s179, 3
      %s183 = scalar_select %p182, %s179, 3
      %s184 = smul.addr %s181, 4
      %s185 = sadd.s32 %s183, %s184
      %s186 = smul.addr %s185, 8
      %s187 = scalar_lea.vmem %s0, %s186
      %p188 = pneg %p49
      %p189 = pneg %p46
      %s190 = smul.u32 4, %s18
      %p191 = scmp.lt.s32.totalorder %s19, 3
      %s192 = scalar_select %p191, %s19, 3
      %p193 = scmp.lt.s32.totalorder %s190, 3
      %s194 = scalar_select %p193, %s190, 3
      %s195 = smul.addr %s192, 4
      %s196 = sadd.s32 %s194, %s195
      %s197 = smul.addr %s196, 8
      %s198 = scalar_lea.vmem %s1, %s197
      %p199 = pneg %p77
      %p200 = pneg %p74
      %p201 = pneg %p98
      %p202 = pneg %p95
      %p203 = pneg %p124
      %p204 = pneg %p121
      %s205 = smul.u32 4, %s18
      %p206 = scmp.lt.s32.totalorder %s205, 3
      %s207 = scalar_select %p206, %s205, 3
      %s208 = smul.addr %s207, 8
      %s209 = scalar_lea.vmem %s3, %s208
      %s210 = smul.u32 4, %s18
      %p211 = scmp.lt.s32.totalorder %s19, 3
      %s212 = scalar_select %p211, %s19, 3
      %p213 = scmp.lt.s32.totalorder %s210, 3
      %s214 = scalar_select %p213, %s210, 3
      %s215 = smul.addr %s212, 4
      %s216 = sadd.s32 %s214, %s215
      %s217 = smul.addr %s216, 8
      %s218 = scalar_lea.vmem %s0, %s217
      %s219 = smul.u32 4, %s18
      %s220 = smul.u32 4, %s18
      %p221 = scmp.lt.s32.totalorder %s19, 3
      %s222 = scalar_select %p221, %s19, 3
      %p223 = scmp.lt.s32.totalorder %s220, 3
      %s224 = scalar_select %p223, %s220, 3
      %s225 = smul.addr %s222, 4
      %s226 = sadd.s32 %s224, %s225
      %s227 = smul.addr %s226, 8
      %s228 = scalar_lea.vmem %s1, %s227
      %s229 = smul.u32 4, %s18
      %s230 = smul.u32 4, %s18
      %p231 = scmp.lt.s32.totalorder %s230, 3
      %s232 = scalar_select %p231, %s230, 3
      %s233 = smul.addr %s232, 8
      %s234 = scalar_lea.vmem %s3, %s233
      %s235 = smul.u32 4, %s18
      %p236 = scmp.eq.s32.totalorder %s19, 0
      // Predicated region
      $region33: #{tpu_custom_call.1} parent=31 // pred_check
        %p237 = pneg %p236
      $region34: #{tpu_custom_call.1} parent=31 // pred_check_branch
        %239 = sbr.rel (%p237) target = $region36
      $region35: #{tpu_custom_call.1} parent=31 // pred_region
        %vm240 = vcmask 7168
        %241 = vst.msk [vmem:[%s234] sm:$0xff] %vm240, 0.0
        %242 = vst.msk [vmem:[%s234 + $0x8] sm:$0xff] %vm240, 0.0
        %243 = vst.msk [vmem:[%s234 + $0x10] sm:$0xff] %vm240, 0.0
        %244 = vst.msk [vmem:[%s234 + $0x18] sm:$0xff] %vm240, 0.0
      $region36: #{tpu_custom_call.1} parent=31 // pred_fallthru
        _
      %v245 = vld [vmem:[%s218] sm:$0xff]
      %v246 = vld [vmem:[%s218 + $0x8] sm:$0xff]
      %v247 = vld [vmem:[%s218 + $0x10] sm:$0xff]
      %v248 = vld [vmem:[%s218 + $0x18] sm:$0xff]
      %v249 = vld [vmem:[%s228] sm:$0xff]
      %v250 = vld [vmem:[%s228 + $0x8] sm:$0xff]
      %v251 = vld [vmem:[%s228 + $0x10] sm:$0xff]
      %v252 = vld [vmem:[%s228 + $0x18] sm:$0xff]
      %v253 = vsub.f32 %v245, %v249
      %v254 = vsub.f32 %v246, %v250
      %v255 = vsub.f32 %v247, %v251
      %v256 = vsub.f32 %v248, %v252
      %v257 = vld [vmem:[%s2] sm:$0x1]
      %v259 = vperm.slane %v257, 0
      %v261 = vmul.f32 %v253, %v259
      %v262 = vmul.f32 %v254, %v259
      %v263 = vmul.f32 %v255, %v259
      %v264 = vmul.f32 %v256, %v259
      %v265 = vld [vmem:[%s234] sm:$0xff]
      %v266 = vld [vmem:[%s234 + $0x8] sm:$0xff]
      %v267 = vld [vmem:[%s234 + $0x10] sm:$0xff]
      %v268 = vld [vmem:[%s234 + $0x18] sm:$0xff]
      %vm269 = vcmask 64512
      %v270 = vsel %vm269, %v261, 0.0
      %271 = vadd.xlane.f32.xlu0 %v270
      %v272 = vpop.xlane.xlu0 %271
      %v273 = vsel %vm269, %v262, 0.0
      %274 = vadd.xlane.f32.xlu0 %v273
      %v275 = vpop.xlane.xlu0 %274
      %v276 = vsel %vm269, %v263, 0.0
      %277 = vadd.xlane.f32.xlu0 %v276
      %v278 = vpop.xlane.xlu0 %277
      %v279 = vsel %vm269, %v264, 0.0
      %280 = vadd.xlane.f32.xlu0 %v279
      %v281 = vpop.xlane.xlu0 %280
      %v282 = vadd.f32 %v265, %v272
      %v283 = vadd.f32 %v266, %v275
      %v284 = vadd.f32 %v267, %v278
      %v285 = vadd.f32 %v268, %v281
      %vm286 = vcmask 7168
      %287 = vst.msk [vmem:[%s234] sm:$0xff] %vm286, %v282
      %288 = vst.msk [vmem:[%s234 + $0x8] sm:$0xff] %vm286, %v283
      %289 = vst.msk [vmem:[%s234 + $0x10] sm:$0xff] %vm286, %v284
      %290 = vst.msk [vmem:[%s234 + $0x18] sm:$0xff] %vm286, %v285
      %s291 = smul.u32 4, %s18
      %p292 = scmp.lt.s32.totalorder %s291, 3
      %s293 = scalar_select %p292, %s291, 3
      %s294 = smul.addr %s293, 8
      %s295 = scalar_lea.vmem %s3, %s294
      // Predicated region
      $region37: #{tpu_custom_call.1} parent=31 // pred_check
        %p296 = pneg %p121
      $region38: #{tpu_custom_call.1} parent=31 // pred_check_branch
        %298 = sbr.rel (%p296) target = $region40
      $region39: #{tpu_custom_call.1} parent=31 // pred_region
        %s299 = smul.u32 4, %s18
      $region40: #{tpu_custom_call.1} parent=31 // pred_fallthru
        _
      // Predicated region
      $region41: #{tpu_custom_call.1} parent=31 // pred_check
        %p300 = pneg %p121
      $region42: #{tpu_custom_call.1} parent=31 // pred_check_branch
        %302 = sbr.rel (%p300) target = $region44
      $region43: #{tpu_custom_call.1} parent=31 // pred_region
        %s303 = smul.u32 4, %s18
        %p304 = scmp.lt.s32.totalorder %s303, 3
        %s305 = scalar_select %p304, %s303, 3
        %s306 = smul.addr %s305, 8
        %s307 = scalar_lea.vmem %s3, %s306
      $region44: #{tpu_custom_call.1} parent=31 // pred_fallthru
        _
    $region32: #{tpu_custom_call.1} parent=5 // pred_fallthru
      _
    %p308 = scmp.le.s32.totalorder 2, %s9
    // Predicated region
    $region45: #{tpu_custom_call.1} parent=5 // pred_check
      %p309 = pneg %p308
    $region46: #{tpu_custom_call.1} parent=5 // pred_check_branch
      %311 = sbr.rel (%p309) target = $region48
    $region47: #{tpu_custom_call.1} parent=5 // pred_region
      %s312 = ssub.s32 %s9, 2
    $region48: #{tpu_custom_call.1} parent=5 // pred_fallthru
      _
  $region6: #{tpu_custom_call.1} parent=0 // loop_footer
    %s13 = sadd.s32 1, %s9
  $region7: #{tpu_custom_call.1} parent=0 // loop_footer_branch
    %8 = sbr.rel target = $region3
  $region8: #{tpu_custom_call.1} parent=0 // loop_exit
    _

</llo_original>
